<compile_context>
chip_gen: v5e
topology: v5e:2x2
jax: 0.10.0
libtpu: 0.0.40
codegen_flags: <defaults>
</compile_context>

<pallas_src>
import functools
import numpy as np
import jax
import jax.numpy as jnp
from jax.experimental import pallas as pl
from jax.experimental.pallas import tpu as pltpu

EPS = 1e-5
HIGHEST = jax.lax.Precision.HIGHEST          # only used by the pure-JAX reference

_CPARAMS = pltpu.CompilerParams(dimension_semantics=("arbitrary",))


def _round_up(x, m):
    return ((x + m - 1) // m) * m


def _full_spec(shape):
    nd = len(shape)
    return pl.BlockSpec(shape, lambda i, nd=nd: (0,) * nd)


# ----------------------------- Pallas kernels -----------------------------
def _affine_kernel(x_ref, w_ref, b_ref, o_ref):
    """(R, Cin)bf16 @ (Cin, M) + (R, 1)f32 -> o (o_ref dtype).  Used for
    ConvTranspose2d(kernel=stride=pool) expressed as a pixel-shuffle matmul."""
    o_ref[...] = (jnp.dot(w_ref[...], x_ref[...].astype(jnp.bfloat16),
                          preferred_element_type=jnp.float32)
                  + b_ref[...]).astype(o_ref.dtype)


def _make_block_kernel(shifts, count, residual, coutp, taps_bf16, has_last):
    """Fused conv_block on the flattened zero-padded grid:
         relu(BN(conv2(relu(BN(conv1(x)))))  [+ conv_skip(x)])  [-> 1x1 conv]
    Each 3x3 conv is one (rows, 9*Cin)@(9*Cin, M) bf16 matmul (f32 accum); the 9
    tap views are built with pltpu.roll, in bf16 when supported.  conv1 and the
    residual skip conv share one MXU pass via row-stacked weights.  BatchNorm
    uses one-pass (E[x^2]-mean^2) training-mode batch statistics over the
    `count` valid (non-padding) pixels selected by the mask."""
    inv = 1.0 / float(count)

    def _taps(v):
        return [v if s == 0 else pltpu.roll(v, s, 1) for s in shifts]

    def _stack(v_bf16):
        if taps_bf16:
            return jnp.concatenate(_taps(v_bf16), axis=0)
        # fallback: this Mosaic build can't lower bf16 roll / unaligned concat
        return jnp.concatenate(_taps(v_bf16.astype(jnp.float32)),
                               axis=0).astype(jnp.bfloat16)

    def _bn(acc, gamma, beta, valid):
        av = acc * valid
        mean = jnp.sum(av, axis=1, keepdims=True) * inv
        ex2 = jnp.sum(av * av, axis=1, keepdims=True) * inv
        var = jnp.maximum(ex2 - mean * mean, 0.0)            # f32 accumulation
        return (acc - mean) * (gamma * jax.lax.rsqrt(var + EPS)) + beta

    def kernel(*refs):
        if has_last:
            (x_ref, w1_ref, g1_ref, b1_ref, w2_ref, g2_ref, b2_ref,
             lw_ref, lb_ref, valid_ref, o_ref) = refs
        else:
            (x_ref, w1_ref, g1_ref, b1_ref, w2_ref, g2_ref, b2_ref,
             valid_ref, o_ref) = refs

        valid = valid_ref[...]                               # (1, M) f32
        stack1 = _stack(x_ref[...])                          # (9*Cin_p, M) bf16
        # conv1 (+ skip conv) fused into one matmul; stack1 dies here, before
        # stack2 is materialized -> lower peak VMEM / vreg pressure.
        acc = jnp.dot(w1_ref[...], stack1, preferred_element_type=jnp.float32)
        if residual:
            acc1, skip = acc[:coutp], acc[coutp:]
        else:
            acc1, skip = acc, None
        # mask before re-tapping: halo / tail columns must be exactly zero
        h = (jnp.maximum(_bn(acc1, g1_ref[...], b1_ref[...], valid), 0.0)
             * valid).astype(jnp.bfloat16)
        stack2 = _stack(h)
        y = _bn(jnp.dot(w2_ref[...], stack2, preferred_element_type=jnp.float32),
                g2_ref[...], b2_ref[...], valid)
        if residual:
            y = y + skip
        y = jnp.maximum(y, 0.0)
        if has_last:
            # fused final 1x1 conv epilogue; halo/tail junk is cropped later,
            # so no valid-mask multiply is needed on this output.
            o_ref[...] = (jnp.dot(lw_ref[...], y.astype(jnp.bfloat16),
                                  preferred_element_type=jnp.float32)
                          + lb_ref[...]).astype(o_ref.dtype)
        else:
            o_ref[...] = (y * valid).astype(o_ref.dtype)     # zero halos for next block

    return kernel


def _probe_roll():
    """Startup probes: (a) which shift convention pltpu.roll uses, so tap shifts
    are correct either way; (b) whether bf16 roll + sublane-concat lowers on this
    Mosaic build (falls back to f32 tap construction if not)."""
    x = jnp.tile(jnp.arange(128, dtype=jnp.float32)[None, :], (8, 1))

    def k32(x_ref, o_ref):
        o_ref[...] = pltpu.roll(x_ref[...], 1, 1)

    y = pl.pallas_call(k32, out_shape=jax.ShapeDtypeStruct((8, 128), jnp.float32),
                       grid=(1,), in_specs=[_full_spec((8, 128))],
                       out_specs=_full_spec((8, 128)),
                       compiler_params=_CPARAMS)(x)
    sign = -1 if float(y[0, 0]) > 64.0 else 1        # jnp.roll convention -> -1

    def k16(x_ref, o_ref):
        v = x_ref[...]
        o_ref[...] = jnp.concatenate([v, pltpu.roll(v, 3, 1)], axis=0)

    taps_bf16 = False
    try:
        xb = x.astype(jnp.bfloat16)
        yb = pl.pallas_call(k16,
                            out_shape=jax.ShapeDtypeStruct((16, 128), jnp.bfloat16),
                            grid=(1,), in_specs=[_full_spec((8, 128))],
                            out_specs=_full_spec((16, 128)),
                            compiler_params=_CPARAMS)(xb)
        jax.block_until_ready(yb)
        exp = jnp.roll(xb, 3 if sign == -1 else -3, axis=1)
        taps_bf16 = (bool(jnp.array_equal(yb[:8], xb))
                     and bool(jnp.array_equal(yb[8:], exp)))
    except Exception:
        taps_bf16 = False
    return sign, taps_bf16


# ----------------------------- layout helpers (XLA glue) -----------------------------
class _Geom:
    def __init__(self, n, h, w):
        self.N, self.H, self.W = n, h, w
        self.Hp, self.Wp = h + 2, w + 2
        self.Mp = n * self.Hp * self.Wp          # flattened zero-padded grid
        self.Mr = _round_up(self.Mp, 128)        # lane-dense length
        self.count = n * h * w                   # number of valid pixels


def _tap_shifts(g, sign):
    # tap (dy, dx) reads flat offset (dy-1)*Wp + (dx-1); interior pixels never wrap.
    return tuple(((sign * ((dy - 1) * g.Wp + (dx - 1))) % g.Mr)
                 for dy in range(3) for dx in range(3))


def _to_padded_flat(x_cnhw, g):
    c = x_cnhw.shape[0]
    xp = jnp.pad(x_cnhw, ((0, 0), (0, 0), (1, 1), (1, 1)))
    return jnp.pad(xp.reshape(c, g.Mp), ((0, 0), (0, g.Mr - g.Mp)))


def _from_padded_flat(x_flat, g):
    c = x_flat.shape[0]
    x = x_flat[:, :g.Mp].reshape(c, g.N, g.Hp, g.Wp)
    return x[:, :, 1:g.H + 1, 1:g.W + 1]


def _valid_mask(g):
    return _to_padded_flat(jnp.ones((1, g.N, g.H, g.W), jnp.float32), g)


def _pad_channels(x, cp):
    return jnp.pad(x, ((0, cp - x.shape[0]), (0, 0)))


# ----------------------------- one-time weight prepacking -----------------------------
def prepack_params(params, pool, residual):
    s = pool

    def prep_conv_w(w, co_p, ci_p):
        co, ci = w.shape[:2]
        wp = jnp.pad(w, ((0, co_p - co), (0, ci_p - ci), (0, 0), (0, 0)))
        return (jnp.transpose(wp, (0, 2, 3, 1))              # (co, ky, kx, ci)
                .reshape(co_p, 9 * ci_p).astype(jnp.bfloat16))

    def prep_bn(gm, bt, co_p):
        co = gm.shape[0]
        gp = jnp.pad(gm.astype(jnp.float32), (0, co_p - co), constant_values=1.0)
        bp = jnp.pad(bt.astype(jnp.float32), (0, co_p - co))
        return gp.reshape(co_p, 1), bp.reshape(co_p, 1)

    def prep_block(b, ci_p, co_p):
        w1s = prep_conv_w(b['w1'], co_p, ci_p)
        if residual:
            # row-stacked: conv1 and skip conv computed in one MXU pass
            w1s = jnp.concatenate([w1s, prep_conv_w(b['wskip'], co_p, ci_p)], axis=0)
        g1, b1 = prep_bn(b['g1'], b['b1'], co_p)
        g2, b2 = prep_bn(b['g2'], b['b2'], co_p)
        return dict(w1s=w1s, g1=g1, b1=b1,
                    w2=prep_conv_w(b['w2'], co_p, co_p), g2=g2, b2=b2)

    levels = []
    prev_cp = None                    # channel count of the tensor feeding this convT
    for lvl in params['levels']:
        cin_up, cout_up = lvl['up_w'].shape[:2]
        cin_cols = cin_up if prev_cp is None else prev_cp
        w_up = jnp.transpose(lvl['up_w'], (1, 2, 3, 0)).reshape(cout_up * s * s, cin_up)
        w_up = jnp.pad(w_up, ((0, 0), (0, cin_cols - cin_up))).astype(jnp.bfloat16)
        b_up = jnp.repeat(lvl['up_b'], s * s).reshape(-1, 1).astype(jnp.float32)

        cout, cin_b1 = lvl['block1']['w1'].shape[:2]
        cin_p, cout_p = _round_up(cin_b1, 8), _round_up(cout, 8)
        levels.append(dict(up_w=w_up, up_b=b_up,
                           block1=prep_block(lvl['block1'], cin_p, cout_p),
                           block2=prep_block(lvl['block2'], cout_p, cout_p)))
        prev_cp = cout_p

    out_ch, cl = params['last_w'].shape[:2]
    lw = jnp.pad(params['last_w'][:, :, 0, 0],
                 ((0, 0), (0, prev_cp - cl))).astype(jnp.bfloat16)
    lb = params['last_b'].reshape(out_ch, 1).astype(jnp.float32)
    return dict(levels=levels, last=dict(w=lw, b=lb))


# ----------------------------- Pallas wrappers -----------------------------
def pallas_conv_transpose(x_cnhw, w2, b2, s):
    """ConvTranspose2d(kernel=stride=s, padding=0, bias=True) on (C,N,H,W);
    prepacked weights, bf16 output."""
    cin, n, h, w = x_cnhw.shape
    r = w2.shape[0]
    cout = r // (s * s)
    y = pl.pallas_call(
        _affine_kernel,
        out_shape=jax.ShapeDtypeStruct((r, n * h * w), jnp.bfloat16),
        grid=(1,),
        in_specs=[_full_spec((cin, n * h * w)), _full_spec(tuple(w2.shape)),
                  _full_spec(tuple(b2.shape))],
        out_specs=_full_spec((r, n * h * w)),
        compiler_params=_CPARAMS,
    )(x_cnhw.reshape(cin, n * h * w), w2, b2)
    y = y.reshape(cout, s, s, n, h, w)
    return jnp.transpose(y, (0, 3, 4, 1, 5, 2)).reshape(cout, n, h * s, w * s)


def pallas_conv_block(x_flat, bp, g, residual, shifts, valid, taps_bf16, last=None):
    """x_flat: (Cin_p, Mr) bf16 padded-flat activation (pad rows / halo / tail zero)."""
    coutp = bp['g1'].shape[0]
    args = [x_flat, bp['w1s'], bp['g1'], bp['b1'], bp['w2'], bp['g2'], bp['b2']]
    if last is not None:
        args += [last['w'], last['b']]
    args.append(valid)
    if last is not None:
        out_sd = jax.ShapeDtypeStruct((last['w'].shape[0], g.Mr), jnp.float32)
    else:
        out_sd = jax.ShapeDtypeStruct((coutp, g.Mr), jnp.bfloat16)
    return pl.pallas_call(
        _make_block_kernel(shifts, g.count, residual, coutp, taps_bf16,
                           last is not None),
        out_shape=out_sd,
        grid=(1,),
        in_specs=[_full_spec(a.shape) for a in args],
        out_specs=_full_spec(out_sd.shape),
        compiler_params=_CPARAMS,
    )(*args)


def u_decoder_fwd(features_nchw, packed, *, residual, pool, roll_sign, taps_bf16):
    feats = [jnp.transpose(f, (1, 0, 2, 3)) for f in features_nchw]   # (C,N,H,W)
    out = feats.pop()
    n_lvls = len(packed['levels'])
    final = None
    for idx, lvl in enumerate(packed['levels']):
        up = pallas_conv_transpose(out, lvl['up_w'], lvl['up_b'], pool)   # bf16
        skip = feats.pop().astype(jnp.bfloat16)
        # TODO(synk): fuse this concat/pad into block1 (split w1/wskip along Cin).
        cat = jnp.concatenate([up, skip], axis=0)
        c, n, h, w = cat.shape
        g = _Geom(n, h, w)
        shifts = _tap_shifts(g, roll_sign)
        valid = _valid_mask(g)
        cin_p = lvl['block1']['w1s'].shape[1] // 9
        x = _pad_channels(_to_padded_flat(cat, g), cin_p)
        h1 = pallas_conv_block(x, lvl['block1'], g, residual, shifts, valid, taps_bf16)
        last = packed['last'] if idx == n_lvls - 1 else None
        h2 = pallas_conv_block(h1, lvl['block2'], g, residual, shifts, valid,
                               taps_bf16, last=last)
        if last is None:
            out = _from_padded_flat(h2, g)           # bf16 (Cout_p, N, H, W)
        else:
            final = _from_padded_flat(h2, g)         # f32  (out_ch, N, H, W)
    return jnp.transpose(final, (1, 0, 2, 3))        # (N, out_ch, H, W)


# ----------------------------- parameter init -----------------------------
def init_params(key, in_ch, out_ch, depth, ksize, pool):
    keys = iter(jax.random.split(key, 256))

    def conv_w(cout, cin, k):
        return 0.2 * jax.random.normal(next(keys), (cout, cin, k, k), jnp.float32)

    def bn(c):
        g = 0.5 + jax.random.uniform(next(keys), (c,), jnp.float32)
        b = 0.1 * jax.random.normal(next(keys), (c,), jnp.float32)
        return g, b

    def make_block(cin, cout):
        g1, b1 = bn(cout)
        g2, b2 = bn(cout)
        return dict(w1=conv_w(cout, cin, ksize), g1=g1, b1=b1,
                    w2=conv_w(cout, cout, ksize), g2=g2, b2=b2,
                    wskip=conv_w(cout, cin, ksize))

    levels = []
    for i in range(depth - 1):
        cin, cout = in_ch // 2 ** i, in_ch // 2 ** (i + 1)
        up_w = 0.2 * jax.random.normal(next(keys), (cin, cout, pool, pool), jnp.float32)
        up_b = 0.1 * jax.random.normal(next(keys), (cout,), jnp.float32)
        levels.append(dict(up_w=up_w, up_b=up_b,
                           block1=make_block(cin, cout),
                           block2=make_block(cout, cout)))
    cl = in_ch // 2 ** (depth - 1)
    last_w = 0.2 * jax.random.normal(next(keys), (out_ch, cl, 1, 1), jnp.float32)
    last_b = 0.1 * jax.random.normal(next(keys), (out_ch,), jnp.float32)
    return dict(levels=levels, last_w=last_w, last_b=last_b)


# --------------------- pure-JAX reference (NCHW, PyTorch semantics) ---------------------
def _ref_conv(x, w):
    k = w.shape[2]
    return jax.lax.conv_general_dilated(
        x, w, (1, 1), [(k // 2, k // 2)] * 2,
        dimension_numbers=('NCHW', 'OIHW', 'NCHW'), precision=HIGHEST)


def _ref_bn(x, g, b):
    m = jnp.mean(x, axis=(0, 2, 3), keepdims=True)
    v = jnp.mean((x - m) ** 2, axis=(0, 2, 3), keepdims=True)
    return (x - m) * jax.lax.rsqrt(v + EPS) * g[None, :, None, None] + b[None, :, None, None]


def _ref_block(x, p, residual):
    h = jax.nn.relu(_ref_bn(_ref_conv(x, p['w1']), p['g1'], p['b1']))
    h = _ref_bn(_ref_conv(h, p['w2']), p['g2'], p['b2'])
    if residual:
        h = h + _ref_conv(x, p['wskip'])
    return jax.nn.relu(h)


def _ref_convT(x, w, b, s):
    y = jnp.einsum('nchw,cdab->ndhawb', x, w, precision=HIGHEST)
    N, Co, H, _, W, _ = y.shape
    return y.reshape(N, Co, H * s, W * s) + b[None, :, None, None]


def ref_decoder(features_nchw, params, residual, pool):
    feats = list(features_nchw)
    out = feats.pop()
    for lvl in params['levels']:
        out = jnp.concatenate(
            [_ref_convT(out, lvl['up_w'], lvl['up_b'], pool), feats.pop()], axis=1)
        out = _ref_block(out, lvl['block1'], residual)
        out = _ref_block(out, lvl['block2'], residual)
    w = params['last_w'][:, :, 0, 0]
    return (jnp.einsum('nchw,oc->nohw', out, w, precision=HIGHEST)
            + params['last_b'][None, :, None, None])


# ----------------------------- main -----------------------------
if __name__ == "__main__":
    # U_decoder(ndim=2, in_ch=16, out_ch=2, depth=3, kernel_size=3, stride=1,
    #           bias=False, pool_size=2, residual=True)
    NDIM, IN_CH, OUT_CH, DEPTH = 2, 16, 2, 3
    KSIZE, STRIDE, BIAS, POOL, RESIDUAL = 3, 1, False, 2, True
    N, BASE = 2, 8   # deepest feature map is 8x8

    key = jax.random.PRNGKey(0)
    kp, kf = jax.random.split(key)
    params = init_params(kp, IN_CH, OUT_CH, DEPTH, KSIZE, POOL)

    # encoder-style feature list (shallowest first, deepest last -> .pop() order)
    fkeys = jax.random.split(kf, DEPTH)
    features_nchw = []
    for i in range(DEPTH):
        c = IN_CH // 2 ** (DEPTH - 1 - i)
        hw = BASE * 2 ** (DEPTH - 1 - i)
        features_nchw.append(jax.random.normal(fkeys[i], (N, c, hw, hw), jnp.float32))
    # -> [(2,4,32,32), (2,8,16,16), (2,16,8,8)]

    roll_sign, taps_bf16 = _probe_roll()
    packed = prepack_params(params, POOL, RESIDUAL)       # one-time weight packing

    fwd = jax.jit(functools.partial(u_decoder_fwd, residual=RESIDUAL, pool=POOL,
                                    roll_sign=roll_sign, taps_bf16=taps_bf16))
    out_nchw = fwd(tuple(features_nchw), packed)
    jax.block_until_ready(out_nchw)

    ref = ref_decoder(features_nchw, params, RESIDUAL, POOL)
    # tolerance reflects bf16 MXU operands / bf16 inter-block activations
    # (f32 accumulation) vs the f32-HIGHEST reference
    np.testing.assert_allclose(np.asarray(out_nchw), np.asarray(ref),
                               rtol=5e-2, atol=5e-2)
    assert out_nchw.shape == (N, OUT_CH, BASE * 2 ** (DEPTH - 1), BASE * 2 ** (DEPTH - 1))
    print("KERNEL_OK")
</pallas_src>

<mosaic_0001>
module attributes {stable_mosaic.version = 11 : i64} {
  func.func @k32(%arg0: i32, %arg1: memref<8x128xf32, #tpu.memory_space<vmem>>, %arg2: memref<8x128xf32, #tpu.memory_space<vmem>>) attributes {dimension_semantics = [#tpu.dimension_semantics<arbitrary>], iteration_bounds = array<i64: 1>, scalar_prefetch = 0 : i64, scratch_operands = 0 : i64, tpu.core_type = #tpu.core_type<tc>, window_params = [{pipeline_mode = #tpu.pipeline_mode<synchronous>, transform_indices = @transform_0, window_bounds = array<i64: 8, 128>}, {pipeline_mode = #tpu.pipeline_mode<synchronous>, transform_indices = @transform_1, window_bounds = array<i64: 8, 128>}]} {
    %c0 = arith.constant 0 : index
    %c0_0 = arith.constant 0 : index
    %0 = vector.load %arg1[%c0, %c0_0] : memref<8x128xf32, #tpu.memory_space<vmem>>, vector<8x128xf32>
    %c1_i32 = arith.constant 1 : i32
    %1 = tpu.dynamic_rotate %0 by %c1_i32 dim 1 : vector<8x128xf32>, i32 -> vector<8x128xf32>
    %c0_1 = arith.constant 0 : index
    %c0_2 = arith.constant 0 : index
    %2 = vector.load %arg2[%c0_1, %c0_2] : memref<8x128xf32, #tpu.memory_space<vmem>>, vector<8x128xf32>
    tpu.vector_store %arg2[%c0_1, %c0_2], %1 {strides = array<i32>} : memref<8x128xf32, #tpu.memory_space<vmem>>, vector<8x128xf32>,
    return
  }
  func.func @transform_0(%arg0: i32) -> (i32, i32) {
    %c0_i32 = arith.constant 0 : i32
    %c0_i32_0 = arith.constant 0 : i32
    %c0_i32_1 = arith.constant 0 : i32
    return %c0_i32, %c0_i32_0 : i32, i32
  }
  func.func @transform_1(%arg0: i32) -> (i32, i32) {
    %c0_i32 = arith.constant 0 : i32
    %c0_i32_0 = arith.constant 0 : i32
    %c0_i32_1 = arith.constant 0 : i32
    return %c0_i32, %c0_i32_0 : i32, i32
  }
}

</mosaic_0001>

<llo_original>
// kernel: tpu_custom_call.1
$region0: #{tpu_custom_call.1}
  #allocation0 [shape = 'u32[]', space=smem, size = 0x4, offset = 0x4, fixed_abs, tag = 'smem constant byte address 0x4 - core index']
  #allocation1 [shape = 'u32[72,128]{1,0:T(1,128)}', space=vmem, size = 0x9000, scoped, tag = 'internal scratch']
  %s0 = inlined_call_operand.hbm [shape: f32[8,128], index: 0, kind: input, shape index: {}]
  %s1 = inlined_call_operand.hbm [shape: f32[8,128], index: 1, kind: output, shape index: {}]
  %s2 = sld [smem:[#allocation0]]
  $region18: #{tpu_custom_call.1} parent=0
    _
  %s4 = ssub.s32 1, %s2
  %s5 = scalar_select 0, %s4, %s2
  $region1: #{tpu_custom_call.1} parent=0
    #allocation2 [shape = 'u8[4096]{0}', space=vmem, size = 0x1000, scoped, tag = 'input window, operand 0, single buffered']
    #allocation3 [shape = 's32[1]{0}', space=sflag, size = 0x4, scoped, tag = 'scoped memory for tpu_custom_call.1']
    #allocation4 [shape = 's32[1]{0}', space=sflag, size = 0x4, scoped, tag = 'scoped memory for tpu_custom_call.1']
    #allocation5 [shape = 'u8[4096]{0}', space=vmem, size = 0x1000, scoped, tag = 'output window, operand 0, single buffered']
    %6 = vsyncpa [#allocation3], 0
    %7 = vsyncpa [#allocation4], 0
    // Predicated region
    $region2: #{tpu_custom_call.1} parent=1 // pred_check
      _
    $region3: #{tpu_custom_call.1} parent=1 // pred_check_branch
      %9 = sbr.rel (0) target = $region5
    $region4: #{tpu_custom_call.1} parent=1 // pred_region
      %11 = vsyncadd [#allocation3], 0
      %s13 = sshll.u32 %s0, 4
      %s14 = int_to_ptr.hbm [resolvable:$true] %s13
      %s15 = sshll.u32 [#allocation2], 4
      %s16 = int_to_ptr.vmem [resolvable:$true] %s15
      %18 = dma.hbm_to_vmem [thread:$0]  %s14, 128, %s16, [#allocation3]
    $region5: #{tpu_custom_call.1} parent=1 // pred_fallthru
      _
    // Predicated region
    $region6: #{tpu_custom_call.1} parent=1 // pred_check
      _
    $region7: #{tpu_custom_call.1} parent=1 // pred_check_branch
      %20 = sbr.rel (0) target = $region9
    $region8: #{tpu_custom_call.1} parent=1 // pred_region
      %22 = dma.done [#allocation3], 128
    $region9: #{tpu_custom_call.1} parent=1 // pred_fallthru
      _
    %v23 = vld [vmem:[#allocation2] sm:$0xff]
    %24 = vrot.lane.b32.xlu0 %v23, 1
    %v25 = vpop.permute.xlu0 %24
    %26 = vst [vmem:[#allocation5] sm:$0xff] %v25
    // Predicated region
    $region10: #{tpu_custom_call.1} parent=1 // pred_check
      _
    $region11: #{tpu_custom_call.1} parent=1 // pred_check_branch
      %28 = sbr.rel (0) target = $region13
    $region12: #{tpu_custom_call.1} parent=1 // pred_region
      %30 = vsyncadd [#allocation4], 0
      %s32 = sshll.u32 [#allocation5], 4
      %s33 = int_to_ptr.vmem [resolvable:$true] %s32
      %s34 = sshll.u32 %s1, 4
      %s35 = int_to_ptr.hbm [resolvable:$true] %s34
      %37 = dma.vmem_to_hbm [thread:$0]  %s33, 128, %s35, [#allocation4]
    $region13: #{tpu_custom_call.1} parent=1 // pred_fallthru
      _
    // Predicated region
    $region14: #{tpu_custom_call.1} parent=1 // pred_check
      _
    $region15: #{tpu_custom_call.1} parent=1 // pred_check_branch
      %39 = sbr.rel (0) target = $region17
    $region16: #{tpu_custom_call.1} parent=1 // pred_region
      %41 = dma.done [#allocation4], 128
    $region17: #{tpu_custom_call.1} parent=1 // pred_fallthru
      _
    %42 = vsyncpa [#allocation3], 1
    %43 = vsyncpa [#allocation4], 1

</llo_original>
